<compile_context>
chip_gen: v7x
topology: tpu7x:2x2x1
jax: 0.10.0
libtpu: 0.0.40
codegen_flags: <defaults>
</compile_context>

<pallas_src>
import functools

import jax
import jax.numpy as jnp
from jax.experimental import pallas as pl
from jax.experimental.pallas import tpu as pltpu


def _soft_ce_kernel(x_ref, t_ref, o_ref, *, n_total: int, tile_rows: int):
    i = pl.program_id(0)

    # Upcast only inside the kernel; HBM traffic stays at the caller's dtype.
    x = x_ref[...].astype(jnp.float32)
    t = t_ref[...].astype(jnp.float32)

    # Per row: sum_c t * (-log_softmax(x))
    #        = lse * sum_c(t) - sum_c((x - m) * t)   (stable, no materialized
    #                                                 log_softmax / NLL temps)
    m = jnp.max(x, axis=1, keepdims=True)
    xs = x - m
    lse = jnp.log(jnp.sum(jnp.exp(xs), axis=1, keepdims=True))
    row_loss = lse * jnp.sum(t, axis=1, keepdims=True) - jnp.sum(
        xs * t, axis=1, keepdims=True
    )

    # Single per-row SELECT (tn,1) to drop rows belonging to grid padding of
    # the last partial tile. Select semantics (jnp.where) discard any stale
    # Inf/NaN produced by garbage rows; much cheaper than masking x/t over the
    # full (tn,C) tile.
    row = jax.lax.broadcasted_iota(jnp.int32, (row_loss.shape[0], 1), 0) + i * tile_rows
    row_loss = jnp.where(row < n_total, row_loss, 0.0)

    partial = jnp.sum(row_loss)

    # Per-tile partial sum, replicated into a lane-dense (8,128) block so each
    # grid step writes a disjoint output block (grid axis stays "parallel").
    o_ref[...] = jnp.full(o_ref.shape, partial, dtype=jnp.float32)


def _vmem_capacity_bytes() -> int:
    """Physical VMEM per TensorCore; conservative (v7x) fallback if unknown."""
    try:
        return int(pltpu.get_tpu_info().vmem_capacity_bytes)
    except Exception:  # interpret mode / old runtime
        return 64 * 1024 * 1024


def _row_multiple(*dtypes) -> int:
    """Sublane-packing-friendly row multiple: 8 for f32, 16 for bf16, 32 for i8."""
    min_itemsize = min(jnp.dtype(d).itemsize for d in dtypes)
    min_itemsize = max(min(min_itemsize, 4), 1)
    return 8 * (4 // min_itemsize)


def _choose_tile_rows(n: int, c: int, in_bytes_per_elem: int, mult: int,
                      vmem_cap: int) -> int:
    """Largest row tile whose *true* footprint fits the generation's budget."""
    # 2 pipeline buffers for each input block + ~6 live (tn, C) f32 temps
    # (x/t upcasts, xs, exp(xs), xs*t, slack).
    per_row = 2 * c * in_bytes_per_elem + 6 * c * 4
    budget = min(32 * 1024 * 1024, vmem_cap // 2)
    tn = budget // max(per_row, 1)
    tn = min(tn, 1024)
    tn = (tn // mult) * mult
    if n <= mult:
        return n  # single full-extent block (always legal)
    # TODO(synk): if tn < mult here (huge C), switch to C-axis online-LSE tiling.
    tn = max(tn, mult)
    # Guarantee >= 2 grid steps so v7x's two TensorCores both get work
    # (no effect on v5e/v6e single-TC; costs <=1-2% of roofline).
    half = ((((n + 1) // 2) + mult - 1) // mult) * mult  # round_up(ceil(n/2), mult) < n
    return min(tn, half)


def soft_cross_entropy(inputs: jax.Array, target: jax.Array, *, tile_rows=None):
    """inputs: (N, C) logits, target: (N, C) soft labels -> scalar float32 loss.

    Callers are encouraged to pass bf16 inputs/targets: the kernel is pure HBM
    bandwidth and upcasts to f32 internally, so halving bytes/elem is ~2x wall.
    """
    assert inputs.shape == target.shape and inputs.ndim == 2
    n, c = inputs.shape

    mult = _row_multiple(inputs.dtype, target.dtype)
    in_bytes_per_elem = inputs.dtype.itemsize + target.dtype.itemsize
    vmem_cap = _vmem_capacity_bytes()

    tn = (tile_rows if tile_rows is not None
          else _choose_tile_rows(n, c, in_bytes_per_elem, mult, vmem_cap))
    assert tn == n or tn % mult == 0, (
        f"row tile must cover all rows or be a multiple of {mult} for these dtypes")
    grid_n = pl.cdiv(n, tn)

    kernel = functools.partial(_soft_ce_kernel, n_total=n, tile_rows=tn)

    # Scoped-VMEM request sized to the true footprint, clamped below physical
    # capacity minus headroom for compiler scratch (v7x: 64 MiB physical).
    footprint = 2 * tn * c * in_bytes_per_elem + 6 * tn * c * 4 + 2 * 8 * 128 * 4
    vmem_limit = max(16 * 1024 * 1024, footprint + (4 << 20))
    vmem_limit = min(vmem_limit, max(16 * 1024 * 1024, vmem_cap - (8 << 20)))

    partials = pl.pallas_call(
        kernel,
        out_shape=jax.ShapeDtypeStruct((grid_n * 8, 128), jnp.float32),
        grid=(grid_n,),
        in_specs=[
            pl.BlockSpec((tn, c), lambda i: (i, 0)),
            pl.BlockSpec((tn, c), lambda i: (i, 0)),
        ],
        out_specs=pl.BlockSpec((8, 128), lambda i: (i, 0)),
        compiler_params=pltpu.CompilerParams(
            dimension_semantics=("parallel",),
            vmem_limit_bytes=vmem_limit,
        ),
    )(inputs, target)

    # One partial per tile (replicated across its lane-dense block). Static
    # reshape + index instead of a strided gather; normalize by the global N.
    per_tile = partials.reshape(grid_n, 8, 128)[:, 0, 0]
    return jnp.sum(per_tile) / jnp.float32(n)


if __name__ == "__main__":
    key = jax.random.PRNGKey(0)
    k1, k2, k3, k4, k5, k6 = jax.random.split(key, 6)

    # Case 1: small shapes consistent with the module (sample_num, class_num).
    N, C = 8, 32
    logits = jax.random.normal(k1, (N, C), dtype=jnp.float32)
    target = jax.nn.softmax(jax.random.normal(k2, (N, C), dtype=jnp.float32), axis=1)
    loss = soft_cross_entropy(logits, target)
    jax.block_until_ready(loss)
    ref = jnp.sum(-jax.nn.log_softmax(logits, axis=1) * target) / N
    assert jnp.allclose(loss, ref, atol=1e-4, rtol=1e-5), (loss, ref)

    # Case 2: multi-tile grid + partial-last-tile masking path (explicit tile).
    N2, C2 = 50, 128
    logits2 = jax.random.normal(k3, (N2, C2), dtype=jnp.float32)
    target2 = jax.nn.softmax(jax.random.normal(k4, (N2, C2), dtype=jnp.float32), axis=1)
    loss2 = soft_cross_entropy(logits2, target2, tile_rows=16)
    jax.block_until_ready(loss2)
    ref2 = jnp.sum(-jax.nn.log_softmax(logits2, axis=1) * target2) / N2
    assert jnp.allclose(loss2, ref2, atol=1e-4, rtol=1e-5), (loss2, ref2)

    # Case 3: bf16 inputs (recommended caller dtype), auto tile chooser
    # (exercises the >=2-grid-step cap and bf16 16-row sublane multiple).
    N3, C3 = 40, 64
    logits3 = jax.random.normal(k5, (N3, C3), dtype=jnp.float32).astype(jnp.bfloat16)
    target3 = jax.nn.softmax(
        jax.random.normal(k6, (N3, C3), dtype=jnp.float32), axis=1
    ).astype(jnp.bfloat16)
    loss3 = soft_cross_entropy(logits3, target3)
    jax.block_until_ready(loss3)
    l3 = logits3.astype(jnp.float32)
    t3 = target3.astype(jnp.float32)
    ref3 = jnp.sum(-jax.nn.log_softmax(l3, axis=1) * t3) / N3
    assert jnp.allclose(loss3, ref3, atol=1e-4, rtol=1e-4), (loss3, ref3)

    print("KERNEL_OK")
</pallas_src>

<mosaic_0001>
module attributes {stable_mosaic.version = 11 : i64} {
  func.func @_soft_ce_kernel(%arg0: i32, %arg1: memref<8x32xf32, #tpu.memory_space<vmem>>, %arg2: memref<8x32xf32, #tpu.memory_space<vmem>>, %arg3: memref<8x128xf32, #tpu.memory_space<vmem>>) attributes {dimension_semantics = [#tpu.dimension_semantics<parallel>], iteration_bounds = array<i64: 1>, scalar_prefetch = 0 : i64, scratch_operands = 0 : i64, tpu.core_type = #tpu.core_type<tc>, window_params = [{transform_indices = @transform_0, window_bounds = array<i64: 8, 32>}, {transform_indices = @transform_1, window_bounds = array<i64: 8, 32>}, {transform_indices = @transform_2, window_bounds = array<i64: 8, 128>}]} {
    %c0 = arith.constant 0 : index
    %c0_0 = arith.constant 0 : index
    %0 = vector.load %arg1[%c0, %c0_0] : memref<8x32xf32, #tpu.memory_space<vmem>>, vector<8x32xf32>
    %c0_1 = arith.constant 0 : index
    %c0_2 = arith.constant 0 : index
    %1 = vector.load %arg2[%c0_1, %c0_2] : memref<8x32xf32, #tpu.memory_space<vmem>>, vector<8x32xf32>
    %cst = arith.constant dense<0xFF800000> : vector<8xf32>
    %2 = vector.multi_reduction <maximumf>, %0, %cst [1] : vector<8x32xf32> to vector<8xf32>
    %3 = vector.shape_cast %2 : vector<8xf32> to vector<8x1xf32>
    %4 = vector.broadcast %3 : vector<8x1xf32> to vector<8x32xf32>
    %5 = arith.subf %0, %4 : vector<8x32xf32>
    %6 = math.exp %5 : vector<8x32xf32>
    %cst_3 = arith.constant dense<0.000000e+00> : vector<8xf32>
    %7 = vector.multi_reduction <add>, %6, %cst_3 [1] : vector<8x32xf32> to vector<8xf32>
    %8 = vector.shape_cast %7 : vector<8xf32> to vector<8x1xf32>
    %9 = math.log %8 : vector<8x1xf32>
    %cst_4 = arith.constant dense<0.000000e+00> : vector<8xf32>
    %10 = vector.multi_reduction <add>, %1, %cst_4 [1] : vector<8x32xf32> to vector<8xf32>
    %11 = vector.shape_cast %10 : vector<8xf32> to vector<8x1xf32>
    %12 = arith.mulf %9, %11 : vector<8x1xf32>
    %13 = arith.mulf %5, %1 : vector<8x32xf32>
    %cst_5 = arith.constant dense<0.000000e+00> : vector<8xf32>
    %14 = vector.multi_reduction <add>, %13, %cst_5 [1] : vector<8x32xf32> to vector<8xf32>
    %15 = vector.shape_cast %14 : vector<8xf32> to vector<8x1xf32>
    %16 = arith.subf %12, %15 : vector<8x1xf32>
    %17 = tpu.iota {dimensions = array<i32: 0>} : vector<8x1xi32>
    %c8_i32 = arith.constant 8 : i32
    %18 = arith.muli %arg0, %c8_i32 : i32
    %19 = vector.broadcast %18 : i32 to vector<8x1xi32>
    %20 = arith.addi %17, %19 : vector<8x1xi32>
    %c8_i32_6 = arith.constant 8 : i32
    %21 = vector.broadcast %c8_i32_6 : i32 to vector<8x1xi32>
    %22 = arith.cmpi slt, %20, %21 : vector<8x1xi32>
    %cst_7 = arith.constant 0.000000e+00 : f32
    %23 = vector.broadcast %cst_7 : f32 to vector<8x1xf32>
    %24 = arith.select %22, %16, %23 : vector<8x1xi1>, vector<8x1xf32>
    %25 = vector.shape_cast %24 : vector<8x1xf32> to vector<1x8x1xf32>
    %cst_8 = arith.constant dense<0.000000e+00> : vector<1xf32>
    %26 = vector.multi_reduction <add>, %25, %cst_8 [1, 2] : vector<1x8x1xf32> to vector<1xf32>
    %27 = vector.shape_cast %26 : vector<1xf32> to vector<1x1x1xf32>
    %28 = vector.extract %27[0, 0, 0] : f32 from vector<1x1x1xf32>
    %29 = vector.broadcast %28 : f32 to vector<8x128xf32>
    %c0_9 = arith.constant 0 : index
    %c0_10 = arith.constant 0 : index
    %30 = vector.load %arg3[%c0_9, %c0_10] : memref<8x128xf32, #tpu.memory_space<vmem>>, vector<8x128xf32>
    tpu.vector_store %arg3[%c0_9, %c0_10], %29 {strides = array<i32>} : memref<8x128xf32, #tpu.memory_space<vmem>>, vector<8x128xf32>,
    return
  }
  func.func @transform_0(%arg0: i32) -> (i32, i32) {
    %c0_i32 = arith.constant 0 : i32
    %c0_i32_0 = arith.constant 0 : i32
    return %arg0, %c0_i32 : i32, i32
  }
  func.func @transform_1(%arg0: i32) -> (i32, i32) {
    %c0_i32 = arith.constant 0 : i32
    %c0_i32_0 = arith.constant 0 : i32
    return %arg0, %c0_i32 : i32, i32
  }
  func.func @transform_2(%arg0: i32) -> (i32, i32) {
    %c0_i32 = arith.constant 0 : i32
    %c0_i32_0 = arith.constant 0 : i32
    return %arg0, %c0_i32 : i32, i32
  }
}

</mosaic_0001>

<llo_original>
// kernel: tpu_custom_call.1
$region0: #{tpu_custom_call.1}
  #allocation0 [shape = 'u32[]', space=smem, size = 0x4, offset = 0x4, fixed_abs, tag = 'smem constant byte address 0x4 - core index']
  #allocation1 [shape = 'u32[144,128]{1,0:T(1,128)}', space=vmem, size = 0x12000, scoped, tag = 'internal scratch']
  %s0 = inlined_call_operand.hbm [shape: f32[8,32], index: 0, kind: input, shape index: {}]
  %s1 = inlined_call_operand.hbm [shape: f32[8,32], index: 1, kind: input, shape index: {}]
  %s2 = inlined_call_operand.hbm [shape: f32[8,128], index: 2, kind: output, shape index: {}]
  %s3 = sld [smem:[#allocation0]]
  $region26: #{tpu_custom_call.1} parent=0
    _
  %s5 = ssub.s32 1, %s3
  %s6 = scalar_select 0, %s5, %s3
  $region1: #{tpu_custom_call.1} parent=0
    #allocation2 [shape = 'u8[4096]{0}', space=vmem, size = 0x1000, scoped, tag = 'input window, operand 0, single buffered']
    #allocation3 [shape = 's32[1]{0}', space=sflag, size = 0x4, scoped, tag = 'scoped memory for tpu_custom_call.1']
    #allocation4 [shape = 's32[1]{0}', space=sflag, size = 0x4, scoped, tag = 'scoped memory for tpu_custom_call.1']
    #allocation5 [shape = 'u8[4096]{0}', space=vmem, size = 0x1000, scoped, tag = 'input window, operand 1, single buffered']
    #allocation6 [shape = 's32[1]{0}', space=sflag, size = 0x4, scoped, tag = 'scoped memory for tpu_custom_call.1']
    #allocation7 [shape = 'u8[4096]{0}', space=vmem, size = 0x1000, scoped, tag = 'output window, operand 0, single buffered']
    %7 = vsyncpa [#allocation3], 0
    %8 = vsyncpa [#allocation6], 0
    %9 = vsyncpa [#allocation4], 0
    // Predicated region
    $region2: #{tpu_custom_call.1} parent=1 // pred_check
      _
    $region3: #{tpu_custom_call.1} parent=1 // pred_check_branch
      %11 = sbr.rel (0) target = $region5
    $region4: #{tpu_custom_call.1} parent=1 // pred_region
      %s13 = ssub.s32 128, 128
      %14 = vsyncadd [#allocation3], %s13
      %s16 = sshll.u32 [#allocation2], 4
      %s17 = int_to_ptr.vmem [resolvable:$true] %s16
      %19 = dma.hbm_to_vmem [thread:$0]  %s0, 128, %s17, [#allocation3]
    $region5: #{tpu_custom_call.1} parent=1 // pred_fallthru
      _
    // Predicated region
    $region6: #{tpu_custom_call.1} parent=1 // pred_check
      _
    $region7: #{tpu_custom_call.1} parent=1 // pred_check_branch
      %21 = sbr.rel (0) target = $region9
    $region8: #{tpu_custom_call.1} parent=1 // pred_region
      %s23 = ssub.s32 128, 128
      %24 = vsyncadd [#allocation6], %s23
      %s26 = sshll.u32 [#allocation5], 4
      %s27 = int_to_ptr.vmem [resolvable:$true] %s26
      %29 = dma.hbm_to_vmem [thread:$0]  %s1, 128, %s27, [#allocation6]
    $region9: #{tpu_custom_call.1} parent=1 // pred_fallthru
      _
    // Predicated region
    $region10: #{tpu_custom_call.1} parent=1 // pred_check
      _
    $region11: #{tpu_custom_call.1} parent=1 // pred_check_branch
      %31 = sbr.rel (0) target = $region13
    $region12: #{tpu_custom_call.1} parent=1 // pred_region
      %32 = dma.done [#allocation3], 128
    $region13: #{tpu_custom_call.1} parent=1 // pred_fallthru
      _
    // Predicated region
    $region14: #{tpu_custom_call.1} parent=1 // pred_check
      _
    $region15: #{tpu_custom_call.1} parent=1 // pred_check_branch
      %34 = sbr.rel (0) target = $region17
    $region16: #{tpu_custom_call.1} parent=1 // pred_region
      %35 = dma.done [#allocation6], 128
    $region17: #{tpu_custom_call.1} parent=1 // pred_fallthru
      _
    %v36 = vld [vmem:[#allocation2] sm:$0xff]
    %v37 = vld [vmem:[#allocation5] sm:$0xff]
    %vm38 = vcmask 261120
    %v39 = vsel %vm38, %v36, -inf
    %40 = vmax.xlane.f32.xlu0 %v39
    %v41 = vpop.xlane.xlu0 %40
    %v42 = vsub.f32 %v36, %v41
    %v43 = vmul.f32 %v42, 1.442695
    %v44 = vpow.pop %v43
    %v45 = vsel %vm38, %v44, 0.0
    %46 = vadd.xlane.f32.xlu0 %v45
    %v47 = vpop.xlane.xlu0 %46
    %v48 = vlog2.pop %v47
    %v49 = vmul.f32 %v48, 0.6931472
    %v50 = vsel %vm38, %v37, 0.0
    %51 = vadd.xlane.f32.xlu0 %v50
    %v52 = vpop.xlane.xlu0 %51
    %v53 = vmul.f32 %v49, %v52
    %v54 = vmul.f32 %v42, %v37
    %v55 = vsel %vm38, %v54, 0.0
    %56 = vadd.xlane.f32.xlu0 %v55
    %v57 = vpop.xlane.xlu0 %56
    %v58 = vsub.f32 %v53, %v57
    %v59 = vlaneseq
    %v60 = vshrl.u32 %v59, 7
    %s61 = smul.u32 0, 8
    %v62 = vstv %s61
    %v63 = vadd.s32 %v60, %v62
    %vm64 = vcmp.lt.s32.totalorder %v63, 8
    %v65 = vsel %vm64, %v58, 0.0
    %vm66 = vcmask 7168
    %v67 = vsel %vm66, %v65, 0.0
    %68 = vadd.xlane.f32.xlu0 %v67
    %v69 = vpop.xlane.xlu0 %68
    %v70 = vrot.slane %v69, 4
    %v71 = vadd.f32 %v69, %v70
    %v72 = vrot.slane %v71, 2
    %v73 = vadd.f32 %v71, %v72
    %v74 = vrot.slane %v73, 1
    %v75 = vadd.f32 %v73, %v74
    %s76 = vtos %v75
    %v77 = vstv %s76
    %78 = vst [vmem:[#allocation7] sm:$0xff] %v77
    // Predicated region
    $region18: #{tpu_custom_call.1} parent=1 // pred_check
      _
    $region19: #{tpu_custom_call.1} parent=1 // pred_check_branch
      %80 = sbr.rel (0) target = $region21
    $region20: #{tpu_custom_call.1} parent=1 // pred_region
      %s82 = ssub.s32 128, 128
      %83 = vsyncadd [#allocation4], %s82
      %s85 = sshll.u32 [#allocation7], 4
      %s86 = int_to_ptr.vmem [resolvable:$true] %s85
      %88 = dma.vmem_to_hbm [thread:$0]  %s86, 128, %s2, [#allocation4]
    $region21: #{tpu_custom_call.1} parent=1 // pred_fallthru
      _
    // Predicated region
    $region22: #{tpu_custom_call.1} parent=1 // pred_check
      _
    $region23: #{tpu_custom_call.1} parent=1 // pred_check_branch
      %90 = sbr.rel (0) target = $region25
    $region24: #{tpu_custom_call.1} parent=1 // pred_region
      %91 = dma.done [#allocation4], 128
    $region25: #{tpu_custom_call.1} parent=1 // pred_fallthru
      _
    %92 = vsyncpa [#allocation3], 1
    %93 = vsyncpa [#allocation6], 1
    %94 = vsyncpa [#allocation4], 1

</llo_original>
